<compile_context>
chip_gen: v5e
topology: v5e:2x2
jax: 0.10.0
libtpu: 0.0.40
codegen_flags: <defaults>
</compile_context>

<pallas_src>
import functools

import jax
import jax.numpy as jnp
from jax.experimental import pallas as pl
from jax.experimental.pallas import tpu as pltpu

LANE = 128  # TPU vreg lane width; feature dims padded to this for lane-dense matmuls/stores.


def _round_up(n, m):
    return ((n + m - 1) // m) * m


def _fused_mlp_kernel(z_ref, w0_ref, wrest_ref, b_ref, o_ref, *, acts):
    """One grid step = one batch tile.

    z_ref     : (TB, din)        f32   activations for this batch tile
    w0_ref    : (din, Dp)        bf16  first-layer weight (output dim padded to Dp)
    wrest_ref : (L-1, Dp, Dp)    bf16  remaining weights, stacked
    b_ref     : (L, 1, Dp)       f32   biases, stacked
    o_ref     : (TB, Dp)         f32   output tile (lane-dense)

    Every layer: MXU matmul (bf16 x bf16 -> f32 accumulate) + f32 bias add (VPU) +
    ReLU (VPU) / tanh (EUP).  Intermediates live only in vregs.
    """
    h = z_ref[...]
    for i, act in enumerate(acts):
        w = w0_ref[...] if i == 0 else wrest_ref[i - 1]          # static index -> (Dp, Dp)
        b = b_ref[i]                                             # (1, Dp), broadcasts over rows
        h = jnp.dot(h.astype(jnp.bfloat16), w, preferred_element_type=jnp.float32) + b
        if act == "relu":
            h = jnp.maximum(h, 0.0)
        elif act == "tanh":
            h = jnp.tanh(h)
        elif act == "none":
            pass
        else:
            raise ValueError(f"unknown act {act}")
    o_ref[...] = h.astype(o_ref.dtype)


def _fused_mlp_call(z_pad, w_first, w_rest, b_all, acts, tb):
    """Single pallas_call for the whole generator MLP, gridded over batch tiles.

    Parameter BlockSpecs use constant index_maps so they are fetched to VMEM once and reused
    across all grid steps.  VMEM footprint here is ~300 KB; if hidden_units ever scales to ~1.5k+
    add pltpu.CompilerParams(vmem_limit_bytes=...) or a K/N tiling grid (v7x only has 64 MiB).
    """
    Bp, din = z_pad.shape
    Dp = w_first.shape[1]
    L = b_all.shape[0]
    grid = (Bp // tb,)

    kernel = functools.partial(_fused_mlp_kernel, acts=tuple(acts))
    return pl.pallas_call(
        kernel,
        out_shape=jax.ShapeDtypeStruct((Bp, Dp), jnp.float32),
        grid=grid,
        in_specs=[
            pl.BlockSpec((tb, din), lambda i: (i, 0)),        # batch tile of z
            pl.BlockSpec((din, Dp), lambda i: (0, 0)),        # first weight, VMEM-resident
            pl.BlockSpec((L - 1, Dp, Dp), lambda i: (0, 0, 0)),  # stacked hidden/out weights
            pl.BlockSpec((L, 1, Dp), lambda i: (0, 0, 0)),    # stacked biases
        ],
        out_specs=pl.BlockSpec((tb, Dp), lambda i: (i, 0)),
        compiler_params=pltpu.CompilerParams(
            dimension_semantics=("parallel",),                # v7x: shard batch tiles over 2 TCs
        ),
    )(z_pad, w_first, w_rest, b_all)


def init_g_mlp_params(key, input_dim, output_dim, hidden_layers, hidden_units):
    """Deterministic init mimicking nn.Linear's uniform(-1/sqrt(fan_in), 1/sqrt(fan_in)).

    Returned weights are (in_features, out_features) so y = x @ W + b.
    """
    dims = [input_dim] + [hidden_units] * hidden_layers + [output_dim]
    params = []
    for i in range(len(dims) - 1):
        fan_in, fan_out = dims[i], dims[i + 1]
        key, kw, kb = jax.random.split(key, 3)
        bound = 1.0 / jnp.sqrt(fan_in)
        w = jax.random.uniform(kw, (fan_in, fan_out), jnp.float32, -bound, bound)
        b = jax.random.uniform(kb, (fan_out,), jnp.float32, -bound, bound)
        params.append((w, b))
    return params


def pack_params(params):
    """Pack per-layer (w, b) into the 3 kernel operands.

    - Feature dims (hidden/output) zero-padded to a common Dp (multiple of 128) -> lane-dense.
      Zero padding is semantics-preserving: padded weight rows/cols and bias lanes are 0,
      ReLU(0)=0, and padded output lanes of the last layer are sliced off by the caller.
    - First weight keeps its unpadded input dim (no per-call z padding needed).
    - Weights cast to bf16 (MXU inputs); biases stay f32.
    """
    L = len(params)
    assert L >= 2, "pack_params assumes at least one hidden layer"  # TODO(synk): 0-hidden case
    din0 = params[0][0].shape[0]
    Dp = _round_up(max(w.shape[1] for w, _ in params), LANE)

    w0, b0 = params[0]
    w_first = jnp.zeros((din0, Dp), jnp.float32).at[:, : w0.shape[1]].set(w0).astype(jnp.bfloat16)

    w_rest = jnp.zeros((L - 1, Dp, Dp), jnp.float32)
    b_all = jnp.zeros((L, 1, Dp), jnp.float32).at[0, 0, : b0.shape[0]].set(b0)
    for i, (w, b) in enumerate(params[1:], start=1):
        w_rest = w_rest.at[i - 1, : w.shape[0], : w.shape[1]].set(w)
        b_all = b_all.at[i, 0, : b.shape[0]].set(b)
    return w_first, w_rest.astype(jnp.bfloat16), b_all


@functools.partial(jax.jit, static_argnames=("output_dim", "acts", "tb_max"))
def gan_mlp_forward(z, packed_params, *, output_dim, acts, tb_max=256):
    """Equivalent of GAN_MLP.forward(z): run the generator MLP (inference only)."""
    w_first, w_rest, b_all = packed_params
    B, _ = z.shape
    tb = min(tb_max, _round_up(B, 8))      # fill MXU rows when batched; sublane-aligned otherwise
    Bp = _round_up(B, tb)
    z = z.astype(jnp.float32)
    if Bp != B:
        z = jnp.pad(z, ((0, Bp - B), (0, 0)))   # only when B is not already tile-aligned
    out_pad = _fused_mlp_call(z, w_first, w_rest, b_all, acts, tb)
    return out_pad[:B, :output_dim]


if __name__ == "__main__":
    # Small config consistent with the module's cfg['G'] dict.
    batch_size = 8      # cfg['batch_size']
    input_dim = 16      # cfg['G']['input_dim']   (latent z dim)
    output_dim = 64     # cfg['G']['output_dim']  (generated sample dim)
    hidden_layers = 2   # cfg['G']['hidden_layers']
    hidden_units = 32   # cfg['G']['hidden_units']

    key = jax.random.PRNGKey(0)
    key_z, key_p = jax.random.split(key)

    z = jax.random.normal(key_z, (batch_size, input_dim), dtype=jnp.float32)
    params = init_g_mlp_params(key_p, input_dim, output_dim, hidden_layers, hidden_units)
    packed = pack_params(params)
    acts = tuple(["relu"] * hidden_layers + ["tanh"])

    out = gan_mlp_forward(z, packed, output_dim=output_dim, acts=acts)
    out = jax.block_until_ready(out)

    # Pure-JAX reference emulating the same numerics (bf16 matmul inputs, f32 accumulate/epilogue).
    def ref_forward(zz, prms):
        h = zz
        for i, (w, b) in enumerate(prms):
            h = jnp.dot(h.astype(jnp.bfloat16), w.astype(jnp.bfloat16),
                        preferred_element_type=jnp.float32) + b
            h = jnp.maximum(h, 0.0) if i < len(prms) - 1 else jnp.tanh(h)
        return h

    ref = jax.block_until_ready(ref_forward(z, params))
    assert out.shape == (batch_size, output_dim)
    assert out.dtype == jnp.float32
    assert jnp.allclose(out, ref, atol=5e-3, rtol=5e-3)

    # Exercise the batched path: grid=(2,) with 256-row tiles, weights VMEM-resident across steps.
    z_big = jax.random.normal(key_z, (512, input_dim), dtype=jnp.float32)
    out_big = jax.block_until_ready(
        gan_mlp_forward(z_big, packed, output_dim=output_dim, acts=acts))
    ref_big = jax.block_until_ready(ref_forward(z_big, params))
    assert out_big.shape == (512, output_dim)
    assert jnp.allclose(out_big, ref_big, atol=5e-3, rtol=5e-3)

    print("KERNEL_OK")
</pallas_src>

<mosaic_0001>
module attributes {stable_mosaic.version = 11 : i64} {
  func.func @_fused_mlp_kernel(%arg0: i32, %arg1: memref<8x16xf32, #tpu.memory_space<vmem>>, %arg2: memref<16x128xbf16, #tpu.memory_space<vmem>>, %arg3: memref<2x128x128xbf16, #tpu.memory_space<vmem>>, %arg4: memref<3x1x128xf32, #tpu.memory_space<vmem>>, %arg5: memref<8x128xf32, #tpu.memory_space<vmem>>) attributes {dimension_semantics = [#tpu.dimension_semantics<parallel>], iteration_bounds = array<i64: 1>, scalar_prefetch = 0 : i64, scratch_operands = 0 : i64, tpu.core_type = #tpu.core_type<tc>, window_params = [{transform_indices = @transform_0, window_bounds = array<i64: 8, 16>}, {pipeline_mode = #tpu.pipeline_mode<synchronous>, transform_indices = @transform_1, window_bounds = array<i64: 16, 128>}, {pipeline_mode = #tpu.pipeline_mode<synchronous>, transform_indices = @transform_2, window_bounds = array<i64: 2, 128, 128>}, {pipeline_mode = #tpu.pipeline_mode<synchronous>, transform_indices = @transform_3, window_bounds = array<i64: 3, 1, 128>}, {transform_indices = @transform_4, window_bounds = array<i64: 8, 128>}]} {
    %c0 = arith.constant 0 : index
    %c0_0 = arith.constant 0 : index
    %0 = vector.load %arg1[%c0, %c0_0] : memref<8x16xf32, #tpu.memory_space<vmem>>, vector<8x16xf32>
    %c0_1 = arith.constant 0 : index
    %c0_2 = arith.constant 0 : index
    %1 = vector.load %arg2[%c0_1, %c0_2] : memref<16x128xbf16, #tpu.memory_space<vmem>>, vector<16x128xbf16>
    %c0_3 = arith.constant 0 : index
    %c0_4 = arith.constant 0 : index
    %c0_5 = arith.constant 0 : index
    %2 = vector.load %arg4[%c0_3, %c0_4, %c0_5] : memref<3x1x128xf32, #tpu.memory_space<vmem>>, vector<1x1x128xf32>
    %3 = vector.shape_cast %2 : vector<1x1x128xf32> to vector<1x128xf32>
    %4 = arith.truncf %0 : vector<8x16xf32> to vector<8x16xbf16>
    %cst = arith.constant dense<0.000000e+00> : vector<8x128xf32>
    %5 = tpu.matmul %4, %1, %cst {dimension_numbers = #tpu.dot_dimension_numbers<[1], [0], [0], [1], [0, 0, 1, 1], [], []>} : vector<8x16xbf16>, vector<16x128xbf16>, vector<8x128xf32> -> vector<8x128xf32>
    %6 = vector.broadcast %3 : vector<1x128xf32> to vector<8x128xf32>
    %7 = arith.addf %5, %6 : vector<8x128xf32>
    %cst_6 = arith.constant 0.000000e+00 : f32
    %8 = vector.broadcast %cst_6 : f32 to vector<8x128xf32>
    %9 = arith.maximumf %7, %8 : vector<8x128xf32>
    %c0_7 = arith.constant 0 : index
    %c0_8 = arith.constant 0 : index
    %c0_9 = arith.constant 0 : index
    %10 = vector.load %arg3[%c0_7, %c0_8, %c0_9] : memref<2x128x128xbf16, #tpu.memory_space<vmem>>, vector<1x128x128xbf16>
    %11 = vector.shape_cast %10 : vector<1x128x128xbf16> to vector<128x128xbf16>
    %c1 = arith.constant 1 : index
    %c0_10 = arith.constant 0 : index
    %c0_11 = arith.constant 0 : index
    %12 = vector.load %arg4[%c1, %c0_10, %c0_11] : memref<3x1x128xf32, #tpu.memory_space<vmem>>, vector<1x1x128xf32>
    %13 = vector.shape_cast %12 : vector<1x1x128xf32> to vector<1x128xf32>
    %14 = arith.truncf %9 : vector<8x128xf32> to vector<8x128xbf16>
    %cst_12 = arith.constant dense<0.000000e+00> : vector<8x128xf32>
    %15 = tpu.matmul %14, %11, %cst_12 {dimension_numbers = #tpu.dot_dimension_numbers<[1], [0], [0], [1], [0, 0, 1, 1], [], []>} : vector<8x128xbf16>, vector<128x128xbf16>, vector<8x128xf32> -> vector<8x128xf32>
    %16 = vector.broadcast %13 : vector<1x128xf32> to vector<8x128xf32>
    %17 = arith.addf %15, %16 : vector<8x128xf32>
    %cst_13 = arith.constant 0.000000e+00 : f32
    %18 = vector.broadcast %cst_13 : f32 to vector<8x128xf32>
    %19 = arith.maximumf %17, %18 : vector<8x128xf32>
    %c1_14 = arith.constant 1 : index
    %c0_15 = arith.constant 0 : index
    %c0_16 = arith.constant 0 : index
    %20 = vector.load %arg3[%c1_14, %c0_15, %c0_16] : memref<2x128x128xbf16, #tpu.memory_space<vmem>>, vector<1x128x128xbf16>
    %21 = vector.shape_cast %20 : vector<1x128x128xbf16> to vector<128x128xbf16>
    %c2 = arith.constant 2 : index
    %c0_17 = arith.constant 0 : index
    %c0_18 = arith.constant 0 : index
    %22 = vector.load %arg4[%c2, %c0_17, %c0_18] : memref<3x1x128xf32, #tpu.memory_space<vmem>>, vector<1x1x128xf32>
    %23 = vector.shape_cast %22 : vector<1x1x128xf32> to vector<1x128xf32>
    %24 = arith.truncf %19 : vector<8x128xf32> to vector<8x128xbf16>
    %cst_19 = arith.constant dense<0.000000e+00> : vector<8x128xf32>
    %25 = tpu.matmul %24, %21, %cst_19 {dimension_numbers = #tpu.dot_dimension_numbers<[1], [0], [0], [1], [0, 0, 1, 1], [], []>} : vector<8x128xbf16>, vector<128x128xbf16>, vector<8x128xf32> -> vector<8x128xf32>
    %26 = vector.broadcast %23 : vector<1x128xf32> to vector<8x128xf32>
    %27 = arith.addf %25, %26 : vector<8x128xf32>
    %28 = math.tanh %27 : vector<8x128xf32>
    %c0_20 = arith.constant 0 : index
    %c0_21 = arith.constant 0 : index
    %29 = vector.load %arg5[%c0_20, %c0_21] : memref<8x128xf32, #tpu.memory_space<vmem>>, vector<8x128xf32>
    tpu.vector_store %arg5[%c0_20, %c0_21], %28 {strides = array<i32>} : memref<8x128xf32, #tpu.memory_space<vmem>>, vector<8x128xf32>,
    return
  }
  func.func @transform_0(%arg0: i32) -> (i32, i32) {
    %c0_i32 = arith.constant 0 : i32
    %c0_i32_0 = arith.constant 0 : i32
    return %arg0, %c0_i32 : i32, i32
  }
  func.func @transform_1(%arg0: i32) -> (i32, i32) {
    %c0_i32 = arith.constant 0 : i32
    %c0_i32_0 = arith.constant 0 : i32
    %c0_i32_1 = arith.constant 0 : i32
    return %c0_i32, %c0_i32_0 : i32, i32
  }
  func.func @transform_2(%arg0: i32) -> (i32, i32, i32) {
    %c0_i32 = arith.constant 0 : i32
    %c0_i32_0 = arith.constant 0 : i32
    %c0_i32_1 = arith.constant 0 : i32
    %c0_i32_2 = arith.constant 0 : i32
    return %c0_i32, %c0_i32_0, %c0_i32_1 : i32, i32, i32
  }
  func.func @transform_3(%arg0: i32) -> (i32, i32, i32) {
    %c0_i32 = arith.constant 0 : i32
    %c0_i32_0 = arith.constant 0 : i32
    %c0_i32_1 = arith.constant 0 : i32
    %c0_i32_2 = arith.constant 0 : i32
    return %c0_i32, %c0_i32_0, %c0_i32_1 : i32, i32, i32
  }
  func.func @transform_4(%arg0: i32) -> (i32, i32) {
    %c0_i32 = arith.constant 0 : i32
    %c0_i32_0 = arith.constant 0 : i32
    return %arg0, %c0_i32 : i32, i32
  }
}

</mosaic_0001>

<llo_original>
// kernel: gan_mlp_forward.1
$region0: #{gan_mlp_forward.1}
  #allocation0 [shape = 'u32[]', space=smem, size = 0x4, offset = 0x4, fixed_abs, tag = 'smem constant byte address 0x4 - core index']
  #allocation1 [shape = 'u32[72,128]{1,0:T(1,128)}', space=vmem, size = 0x9000, scoped, tag = 'internal scratch']
  %s0 = inlined_call_operand.hbm [shape: f32[8,16], index: 0, kind: input, shape index: {}]
  %s1 = inlined_call_operand.hbm [shape: bf16[16,128], index: 1, kind: input, shape index: {}]
  %s2 = inlined_call_operand.hbm [shape: bf16[2,128,128], index: 2, kind: input, shape index: {}]
  %s3 = inlined_call_operand.hbm [shape: f32[3,1,128], index: 3, kind: input, shape index: {}]
  %s4 = inlined_call_operand.hbm [shape: f32[8,128], index: 4, kind: output, shape index: {}]
  %s5 = sld [smem:[#allocation0]]
  $region42: #{gan_mlp_forward.1} parent=0
    _
  %s7 = ssub.s32 1, %s5
  %s8 = scalar_select 0, %s7, %s5
  $region1: #{gan_mlp_forward.1} parent=0
    #allocation2 [shape = 'u8[4096]{0}', space=vmem, size = 0x1000, scoped, tag = 'input window, operand 0, single buffered']
    #allocation3 [shape = 's32[1]{0}', space=sflag, size = 0x4, scoped, tag = 'scoped memory for gan_mlp_forward.1']
    #allocation4 [shape = 's32[1]{0}', space=sflag, size = 0x4, scoped, tag = 'scoped memory for gan_mlp_forward.1']
    #allocation5 [shape = 'u8[4096]{0}', space=vmem, size = 0x1000, scoped, tag = 'input window, operand 1, single buffered']
    #allocation6 [shape = 's32[1]{0}', space=sflag, size = 0x4, scoped, tag = 'scoped memory for gan_mlp_forward.1']
    #allocation7 [shape = 'u8[65536]{0}', space=vmem, size = 0x10000, scoped, tag = 'input window, operand 2, single buffered']
    #allocation8 [shape = 'u8[1536]{0}', space=vmem, size = 0x800, scoped, tag = 'input window, operand 3, single buffered']
    #allocation9 [shape = 's32[1]{0}', space=sflag, size = 0x4, scoped, tag = 'scoped memory for gan_mlp_forward.1']
    #allocation10 [shape = 'u8[4096]{0}', space=vmem, size = 0x1000, scoped, tag = 'output window, operand 0, single buffered']
    %9 = vsyncpa [#allocation3], 0
    %10 = vsyncpa [#allocation6], 0
    %11 = vsyncpa [#allocation9], 0
    %12 = vsyncpa [#allocation4], 0
    // Predicated region
    $region2: #{gan_mlp_forward.1} parent=1 // pred_check
      _
    $region3: #{gan_mlp_forward.1} parent=1 // pred_check_branch
      %14 = sbr.rel (0) target = $region5
    $region4: #{gan_mlp_forward.1} parent=1 // pred_region
      %16 = vsyncadd [#allocation3], 0
      %s18 = sshll.u32 %s0, 4
      %s19 = int_to_ptr.hbm [resolvable:$true] %s18
      %s20 = sshll.u32 [#allocation2], 4
      %s21 = int_to_ptr.vmem [resolvable:$true] %s20
      %23 = dma.hbm_to_vmem [thread:$0]  %s19, 128, %s21, [#allocation3]
    $region5: #{gan_mlp_forward.1} parent=1 // pred_fallthru
      _
    // Predicated region
    $region6: #{gan_mlp_forward.1} parent=1 // pred_check
      _
    $region7: #{gan_mlp_forward.1} parent=1 // pred_check_branch
      %25 = sbr.rel (0) target = $region9
    $region8: #{gan_mlp_forward.1} parent=1 // pred_region
      %27 = vsyncadd [#allocation6], 0
      %s28 = sshll.u32 %s1, 4
      %s29 = int_to_ptr.hbm [resolvable:$true] %s28
      %s30 = sshll.u32 [#allocation5], 4
      %s31 = int_to_ptr.vmem [resolvable:$true] %s30
      %36 = dma.hbm_to_vmem [thread:$0]  %s29, 128, %s31, [#allocation6], 64, 64, 4
    $region9: #{gan_mlp_forward.1} parent=1 // pred_fallthru
      _
    // Predicated region
    $region10: #{gan_mlp_forward.1} parent=1 // pred_check
      _
    $region11: #{gan_mlp_forward.1} parent=1 // pred_check_branch
      %38 = sbr.rel (0) target = $region13
    $region12: #{gan_mlp_forward.1} parent=1 // pred_region
      %40 = vsyncadd [#allocation6], 0
      %s41 = sshll.u32 %s2, 4
      %s42 = int_to_ptr.hbm [resolvable:$true] %s41
      %s43 = sshll.u32 [#allocation7], 4
      %s44 = int_to_ptr.vmem [resolvable:$true] %s43
      %49 = dma.hbm_to_vmem [thread:$0]  %s42, 2048, %s44, [#allocation6], 64, 64, 4
    $region13: #{gan_mlp_forward.1} parent=1 // pred_fallthru
      _
    // Predicated region
    $region14: #{gan_mlp_forward.1} parent=1 // pred_check
      _
    $region15: #{gan_mlp_forward.1} parent=1 // pred_check_branch
      %51 = sbr.rel (0) target = $region17
    $region16: #{gan_mlp_forward.1} parent=1 // pred_region
      %53 = vsyncadd [#allocation9], 0
      %s54 = sshll.u32 %s3, 4
      %s55 = int_to_ptr.hbm [resolvable:$true] %s54
      %s56 = sshll.u32 [#allocation8], 4
      %s57 = int_to_ptr.vmem [resolvable:$true] %s56
      %62 = dma.hbm_to_vmem [thread:$0]  %s55, 48, %s57, [#allocation9], 16, 16, 1
    $region17: #{gan_mlp_forward.1} parent=1 // pred_fallthru
      _
    // Predicated region
    $region18: #{gan_mlp_forward.1} parent=1 // pred_check
      _
    $region19: #{gan_mlp_forward.1} parent=1 // pred_check_branch
      %64 = sbr.rel (0) target = $region21
    $region20: #{gan_mlp_forward.1} parent=1 // pred_region
      %66 = dma.done [#allocation3], 128
    $region21: #{gan_mlp_forward.1} parent=1 // pred_fallthru
      _
    // Predicated region
    $region22: #{gan_mlp_forward.1} parent=1 // pred_check
      _
    $region23: #{gan_mlp_forward.1} parent=1 // pred_check_branch
      %68 = sbr.rel (0) target = $region25
    $region24: #{gan_mlp_forward.1} parent=1 // pred_region
      %70 = dma.done [#allocation6], 128
    $region25: #{gan_mlp_forward.1} parent=1 // pred_fallthru
      _
    // Predicated region
    $region26: #{gan_mlp_forward.1} parent=1 // pred_check
      _
    $region27: #{gan_mlp_forward.1} parent=1 // pred_check_branch
      %72 = sbr.rel (0) target = $region29
    $region28: #{gan_mlp_forward.1} parent=1 // pred_region
      %74 = dma.done [#allocation6], 2048
    $region29: #{gan_mlp_forward.1} parent=1 // pred_fallthru
      _
    // Predicated region
    $region30: #{gan_mlp_forward.1} parent=1 // pred_check
      _
    $region31: #{gan_mlp_forward.1} parent=1 // pred_check_branch
      %76 = sbr.rel (0) target = $region33
    $region32: #{gan_mlp_forward.1} parent=1 // pred_region
      %78 = dma.done [#allocation9], 48
    $region33: #{gan_mlp_forward.1} parent=1 // pred_fallthru
      _
    %v80 = vld [vmem:[#allocation2] sm:$0xff]
    %v81 = vld [vmem:[#allocation5] sm:$0xf]
    %v82 = vld [vmem:[#allocation5 + $0x4] sm:$0xf]
    %v83 = vld [vmem:[#allocation8] sm:$0x1]
    %v84 = vpack.c.bf16 %v80, %v80
    %v86 = vperm.slane %v83, 0
    %v90 = vunpack.c.l.b16 %v81
    %v91 = vunpack.c.l.b16 %v82
    %v92 = vpack.c.b16 %v91, %v90
    %vm94 = vcmask 130048
    %v96 = vsel %vm94, %v84, 0
    %98 = vmatpush.bf16.msra.mxu0 0
    %99 = vmatpush.bf16.msra.mxu0 0
    %100 = vmatpush.bf16.msra.mxu0 0
    %101 = vmatpush.bf16.msra.mxu0 0
    %102 = vmatpush.bf16.msra.mxu0 0
    %103 = vmatpush.bf16.msra.mxu0 0
    %104 = vmatpush.bf16.msra.mxu0 0
    %105 = vmatpush.bf16.msra.mxu0 %v92
    %106 = vmatmul.bf16.gmra.mxu0 %v96
    %v107 = vpop.f32.mrf.mxu0
    %v108 = vadd.f32 %v86, %v107
    %v109 = vpop.f32.mrf.mxu0
    %110 = vdwg.mxu0
    %v111 = vmax.f32 %v108, 0.0
    %v112 = vld [vmem:[#allocation7] sm:$0xf]
    %v113 = vld [vmem:[#allocation7 + $0x4] sm:$0xf]
    %v114 = vld [vmem:[#allocation7 + $0x8] sm:$0xf]
    %v115 = vld [vmem:[#allocation7 + $0xc] sm:$0xf]
    %v116 = vld [vmem:[#allocation7 + $0x10] sm:$0xf]
    %v117 = vld [vmem:[#allocation7 + $0x14] sm:$0xf]
    %v118 = vld [vmem:[#allocation7 + $0x18] sm:$0xf]
    %v119 = vld [vmem:[#allocation7 + $0x1c] sm:$0xf]
    %v120 = vld [vmem:[#allocation7 + $0x20] sm:$0xf]
    %v121 = vld [vmem:[#allocation7 + $0x24] sm:$0xf]
    %v122 = vld [vmem:[#allocation7 + $0x28] sm:$0xf]
    %v123 = vld [vmem:[#allocation7 + $0x2c] sm:$0xf]
    %v124 = vld [vmem:[#allocation7 + $0x30] sm:$0xf]
    %v125 = vld [vmem:[#allocation7 + $0x34] sm:$0xf]
    %v126 = vld [vmem:[#allocation7 + $0x38] sm:$0xf]
    %v127 = vld [vmem:[#allocation7 + $0x3c] sm:$0xf]
    %s128 = scalar_lea.vmem [#allocation8], 1
    %v129 = vld [vmem:[%s128] sm:$0x1]
    %v130 = vpack.c.bf16 %v111, %v111
    %v132 = vperm.slane %v129, 0
    %v150 = vunpack.c.l.b16 %v112
    %v151 = vunpack.c.l.b16 %v113
    %v152 = vunpack.c.l.b16 %v114
    %v153 = vunpack.c.l.b16 %v115
    %v154 = vunpack.c.l.b16 %v116
    %v155 = vunpack.c.l.b16 %v117
    %v156 = vunpack.c.l.b16 %v118
    %v157 = vunpack.c.l.b16 %v119
    %v158 = vunpack.c.l.b16 %v120
    %v159 = vunpack.c.l.b16 %v121
    %v160 = vunpack.c.l.b16 %v122
    %v161 = vunpack.c.l.b16 %v123
    %v162 = vunpack.c.l.b16 %v124
    %v163 = vunpack.c.l.b16 %v125
    %v164 = vunpack.c.l.b16 %v126
    %v165 = vunpack.c.l.b16 %v127
    %v166 = vpack.c.b16 %v151, %v150
    %v167 = vpack.c.b16 %v153, %v152
    %v168 = vpack.c.b16 %v155, %v154
    %v169 = vpack.c.b16 %v157, %v156
    %v170 = vpack.c.b16 %v159, %v158
    %v171 = vpack.c.b16 %v161, %v160
    %v172 = vpack.c.b16 %v163, %v162
    %v173 = vpack.c.b16 %v165, %v164
    %182 = vmatpush.bf16.msra.mxu0 %v173
    %183 = vmatpush.bf16.msra.mxu0 %v172
    %184 = vmatpush.bf16.msra.mxu0 %v171
    %185 = vmatpush.bf16.msra.mxu0 %v170
    %186 = vmatpush.bf16.msra.mxu0 %v169
    %187 = vmatpush.bf16.msra.mxu0 %v168
    %188 = vmatpush.bf16.msra.mxu0 %v167
    %189 = vmatpush.bf16.msra.mxu0 %v166
    %190 = vmatmul.bf16.gmra.mxu0 %v130
    %v191 = vpop.f32.mrf.mxu0
    %v192 = vadd.f32 %v132, %v191
    %v193 = vpop.f32.mrf.mxu0
    %194 = vdwg.mxu0
    %v195 = vmax.f32 %v192, 0.0
    %s196 = scalar_lea.vmem [#allocation7], 64
    %v197 = vld [vmem:[%s196] sm:$0xf]
    %v198 = vld [vmem:[%s196 + $0x4] sm:$0xf]
    %v199 = vld [vmem:[%s196 + $0x8] sm:$0xf]
    %v200 = vld [vmem:[%s196 + $0xc] sm:$0xf]
    %v201 = vld [vmem:[%s196 + $0x10] sm:$0xf]
    %v202 = vld [vmem:[%s196 + $0x14] sm:$0xf]
    %v203 = vld [vmem:[%s196 + $0x18] sm:$0xf]
    %v204 = vld [vmem:[%s196 + $0x1c] sm:$0xf]
    %v205 = vld [vmem:[%s196 + $0x20] sm:$0xf]
    %v206 = vld [vmem:[%s196 + $0x24] sm:$0xf]
    %v207 = vld [vmem:[%s196 + $0x28] sm:$0xf]
    %v208 = vld [vmem:[%s196 + $0x2c] sm:$0xf]
    %v209 = vld [vmem:[%s196 + $0x30] sm:$0xf]
    %v210 = vld [vmem:[%s196 + $0x34] sm:$0xf]
    %v211 = vld [vmem:[%s196 + $0x38] sm:$0xf]
    %v212 = vld [vmem:[%s196 + $0x3c] sm:$0xf]
    %s213 = scalar_lea.vmem [#allocation8], 2
    %v214 = vld [vmem:[%s213] sm:$0x1]
    %v215 = vpack.c.bf16 %v195, %v195
    %v217 = vperm.slane %v214, 0
    %v235 = vunpack.c.l.b16 %v197
    %v236 = vunpack.c.l.b16 %v198
    %v237 = vunpack.c.l.b16 %v199
    %v238 = vunpack.c.l.b16 %v200
    %v239 = vunpack.c.l.b16 %v201
    %v240 = vunpack.c.l.b16 %v202
    %v241 = vunpack.c.l.b16 %v203
    %v242 = vunpack.c.l.b16 %v204
    %v243 = vunpack.c.l.b16 %v205
    %v244 = vunpack.c.l.b16 %v206
    %v245 = vunpack.c.l.b16 %v207
    %v246 = vunpack.c.l.b16 %v208
    %v247 = vunpack.c.l.b16 %v209
    %v248 = vunpack.c.l.b16 %v210
    %v249 = vunpack.c.l.b16 %v211
    %v250 = vunpack.c.l.b16 %v212
    %v251 = vpack.c.b16 %v236, %v235
    %v252 = vpack.c.b16 %v238, %v237
    %v253 = vpack.c.b16 %v240, %v239
    %v254 = vpack.c.b16 %v242, %v241
    %v255 = vpack.c.b16 %v244, %v243
    %v256 = vpack.c.b16 %v246, %v245
    %v257 = vpack.c.b16 %v248, %v247
    %v258 = vpack.c.b16 %v250, %v249
    %267 = vmatpush.bf16.msra.mxu0 %v258
    %268 = vmatpush.bf16.msra.mxu0 %v257
    %269 = vmatpush.bf16.msra.mxu0 %v256
    %270 = vmatpush.bf16.msra.mxu0 %v255
    %271 = vmatpush.bf16.msra.mxu0 %v254
    %272 = vmatpush.bf16.msra.mxu0 %v253
    %273 = vmatpush.bf16.msra.mxu0 %v252
    %274 = vmatpush.bf16.msra.mxu0 %v251
    %275 = vmatmul.bf16.gmra.mxu0 %v215
    %v276 = vpop.f32.mrf.mxu0
    %v277 = vadd.f32 %v217, %v276
    %v278 = vpop.f32.mrf.mxu0
    %279 = vdwg.mxu0
    %v280 = vtanh.pop %v277
    %281 = vst [vmem:[#allocation10] sm:$0xff] %v280
    // Predicated region
    $region34: #{gan_mlp_forward.1} parent=1 // pred_check
      _
    $region35: #{gan_mlp_forward.1} parent=1 // pred_check_branch
      %283 = sbr.rel (0) target = $region37
    $region36: #{gan_mlp_forward.1} parent=1 // pred_region
      %285 = vsyncadd [#allocation4], 0
      %s287 = sshll.u32 [#allocation10], 4
      %s288 = int_to_ptr.vmem [resolvable:$true] %s287
      %s289 = sshll.u32 %s4, 4
      %s290 = int_to_ptr.hbm [resolvable:$true] %s289
      %292 = dma.vmem_to_hbm [thread:$0]  %s288, 128, %s290, [#allocation4]
    $region37: #{gan_mlp_forward.1} parent=1 // pred_fallthru
      _
    // Predicated region
    $region38: #{gan_mlp_forward.1} parent=1 // pred_check
      _
    $region39: #{gan_mlp_forward.1} parent=1 // pred_check_branch
      %294 = sbr.rel (0) target = $region41
    $region40: #{gan_mlp_forward.1} parent=1 // pred_region
      %296 = dma.done [#allocation4], 128
    $region41: #{gan_mlp_forward.1} parent=1 // pred_fallthru
      _
    %297 = vsyncpa [#allocation3], 1
    %298 = vsyncpa [#allocation6], 1
    %299 = vsyncpa [#allocation9], 1
    %300 = vsyncpa [#allocation4], 1

</llo_original>
